<compile_context>
chip_gen: v7x
topology: tpu7x:2x2x1
jax: 0.10.0
libtpu: 0.0.40
codegen_flags: <defaults>
</compile_context>

<pallas_src>
import functools

import jax
import jax.numpy as jnp
from jax.experimental import pallas as pl
from jax.experimental.pallas import tpu as pltpu


def _round_up(x, m):
    return (x + m - 1) // m * m


# ----------------------------------------------------------------------------
# Fused kernel: all local SCL losses + cross-entropy in one launch.
# Grid axis: K tiles of the concatenated (zero-padded) per-layer feature axes.
# ----------------------------------------------------------------------------
def _fused_local_loss_kernel(
    # scalar prefetch
    lids_ref,            # SMEM (num_k_tiles + 1,) i32 : tile -> layer id, -1 sentinel
    # inputs
    a_ref,               # VMEM (N, TK) stream dtype : activations, current K tile
    b_ref,               # VMEM (N, TK) stream dtype : signals,     current K tile
    pred_ref,            # VMEM (N, C)  f32 : final logits (resident)
    tgt_ref,             # VMEM (N, 1)  i32 : targets      (resident)
    t10_ref,             # VMEM (1, N)  i32 : args.T10     (resident)
    # outputs
    out_ref,             # VMEM (2, 128) f32 : row0 = total loss, row1 = CE
    # scratch
    gram_aa_ref,         # VMEM (N, N) f32 : running A @ A.T
    gram_ab_ref,         # VMEM (N, N) f32 : running A @ B.T
    gram_bb_ref,         # VMEM (N, N) f32 : running B @ B.T
    diag_a_ref,          # VMEM (N, 1) f32 : running ||a_i||^2
    diag_b_ref,          # VMEM (N, 1) f32 : running ||b_i||^2
    mask_ref,            # VMEM (N, 1) f32 : filter-target mask
    loss_ref,            # VMEM (1, 1) f32 : running sum of layer losses
    *,
    filter_target,
    scale_c,
    scale_ssl,
    mxu_dtype,
):
    k = pl.program_id(0)
    nk = pl.num_programs(0)
    n, num_classes = pred_ref.shape

    # ---- init: zero accumulators, build the (no-grad) filter-target mask ----
    @pl.when(k == 0)
    def _init():
        gram_aa_ref[...] = jnp.zeros_like(gram_aa_ref)
        gram_ab_ref[...] = jnp.zeros_like(gram_ab_ref)
        gram_bb_ref[...] = jnp.zeros_like(gram_bb_ref)
        diag_a_ref[...] = jnp.zeros_like(diag_a_ref)
        diag_b_ref[...] = jnp.zeros_like(diag_b_ref)
        loss_ref[...] = jnp.zeros_like(loss_ref)
        if filter_target != 0:
            pred = pred_ref[...]
            cls = jax.lax.broadcasted_iota(jnp.int32, (n, num_classes), 1)
            onehot = (cls == jnp.broadcast_to(tgt_ref[...], (n, num_classes))
                      ).astype(jnp.float32)
            mx = jnp.max(pred, axis=1, keepdims=True)
            ex = jnp.exp(pred - mx)
            # exact divide: this softmax feeds a hard |.| < 0.1 threshold
            sm = ex / jnp.sum(ex, axis=1, keepdims=True)
            hit = jnp.where(jnp.abs(sm - onehot) < 0.1, 1.0, 0.0) * onehot
            mask_ref[...] = 1.0 - jnp.sum(hit, axis=1, keepdims=True)  # {0, 1}

    # ---- hot path: three Gram updates + f32 row-norm accumulation per tile ----
    a = a_ref[...]
    if filter_target != 0:
        # binary {0,1} row mask: exact in any dtype; equals masking A pre-norm
        a = a * mask_ref[...].astype(a.dtype)
    b = b_ref[...]

    a_mm = a.astype(mxu_dtype)
    b_mm = b.astype(mxu_dtype)
    dims = (((1,), (1,)), ((), ()))
    gram_aa_ref[...] += jax.lax.dot_general(
        a_mm, a_mm, dims, preferred_element_type=jnp.float32)
    gram_ab_ref[...] += jax.lax.dot_general(
        a_mm, b_mm, dims, preferred_element_type=jnp.float32)
    gram_bb_ref[...] += jax.lax.dot_general(
        b_mm, b_mm, dims, preferred_element_type=jnp.float32)

    af = a.astype(jnp.float32)
    bf = b.astype(jnp.float32)
    diag_a_ref[...] += jnp.sum(af * af, axis=1, keepdims=True)
    diag_b_ref[...] += jnp.sum(bf * bf, axis=1, keepdims=True)

    # ---- layer-boundary flush (sentinel -1 guarantees a flush on the last tile)
    layer_end = lids_ref[k + 1] != lids_ref[k]

    @pl.when(layer_end)
    def _flush():
        rn = jax.lax.broadcasted_iota(jnp.int32, (n, n), 0)
        cn = jax.lax.broadcasted_iota(jnp.int32, (n, n), 1)
        eye_bool = rn == cn
        eye_f = eye_bool.astype(jnp.float32)

        def col_to_row(col):  # (n,1) -> (1,n) via broadcast+mask+reduce
            return jnp.sum(
                jnp.where(eye_bool, jnp.broadcast_to(col, (n, n)), 0.0),
                axis=0, keepdims=True)

        # eps placement matches reference: x / (||x|| + 1e-8)
        denom_a = jnp.sqrt(diag_a_ref[...]) + 1e-8
        denom_b = jnp.sqrt(diag_b_ref[...]) + 1e-8
        denom_a_row = col_to_row(denom_a)
        denom_b_row = col_to_row(denom_b)

        c_mat = gram_ab_ref[...] / (denom_a * denom_b_row)   # A_n @ B_n.T
        d_mat = gram_aa_ref[...] / (denom_a * denom_a_row)   # A_n @ A_n.T
        e_mat = gram_bb_ref[...] / (denom_b * denom_b_row)   # B_n @ B_n.T

        identc = (jnp.broadcast_to(tgt_ref[...], (n, n)) ==
                  jnp.broadcast_to(t10_ref[...], (n, n))).astype(jnp.float32)
        layer_loss = (jnp.mean((c_mat - identc) ** 2) * scale_c
                      + jnp.mean((d_mat - eye_f) ** 2) * scale_ssl
                      + jnp.mean((e_mat - eye_f) ** 2) * scale_ssl)
        loss_ref[...] = loss_ref[...] + layer_loss

        # reset accumulators for the next layer
        gram_aa_ref[...] = jnp.zeros_like(gram_aa_ref)
        gram_ab_ref[...] = jnp.zeros_like(gram_ab_ref)
        gram_bb_ref[...] = jnp.zeros_like(gram_bb_ref)
        diag_a_ref[...] = jnp.zeros_like(diag_a_ref)
        diag_b_ref[...] = jnp.zeros_like(diag_b_ref)

        # ---- last grid step: add the cross-entropy and emit the outputs ----
        @pl.when(k == nk - 1)
        def _final():
            pred = pred_ref[...]
            cls = jax.lax.broadcasted_iota(jnp.int32, (n, num_classes), 1)
            onehot = (cls == jnp.broadcast_to(tgt_ref[...], (n, num_classes))
                      ).astype(jnp.float32)
            mx = jnp.max(pred, axis=1, keepdims=True)
            lse = jnp.log(jnp.sum(jnp.exp(pred - mx), axis=1, keepdims=True)) + mx
            picked = jnp.sum(onehot * pred, axis=1, keepdims=True)
            ce = jnp.mean(lse - picked)
            total = jnp.sum(loss_ref[...]) + ce
            out_ref[...] = jnp.concatenate(
                [jnp.broadcast_to(total, (1, 128)),
                 jnp.broadcast_to(ce, (1, 128))], axis=0)


def fused_local_loss(args, a_list, b_list, target, predictions, *,
                     block_k=4096, stream_dtype=jnp.bfloat16,
                     mxu_dtype=jnp.bfloat16):
    """Sum of all per-layer SCL losses + CE(predictions, target), one launch.

    Returns (total_loss, ce_loss) as device scalars (no host sync here).
    Pass stream_dtype=mxu_dtype=jnp.float32 for closer-to-reference numerics.
    """
    n, num_classes = predictions.shape

    flat, max_f = [], 1
    for a, b in zip(a_list, b_list):
        a2, b2 = a.reshape(n, -1), b.reshape(n, -1)
        flat.append((a2, b2))
        max_f = max(max_f, a2.shape[1], b2.shape[1])
    tk = min(_round_up(block_k, 128), _round_up(max_f, 128))

    # Flatten each layer, cast to the streaming dtype (fused with the pad so the
    # pre-pass copy is half-size), zero-pad its feature axis to a multiple of tk
    # and concatenate all layers along features.  Zero padding is exact (adds
    # nothing to the Gram blocks or the row norms).
    a_chunks, b_chunks, layer_ids = [], [], []
    for li, (a2, b2) in enumerate(flat):
        fp = _round_up(max(a2.shape[1], b2.shape[1]), tk)
        a_chunks.append(jnp.pad(a2.astype(stream_dtype),
                                ((0, 0), (0, fp - a2.shape[1]))))
        b_chunks.append(jnp.pad(b2.astype(stream_dtype),
                                ((0, 0), (0, fp - b2.shape[1]))))
        layer_ids.extend([li] * (fp // tk))
    a_cat = jnp.concatenate(a_chunks, axis=1) if len(a_chunks) > 1 else a_chunks[0]
    b_cat = jnp.concatenate(b_chunks, axis=1) if len(b_chunks) > 1 else b_chunks[0]
    num_k = len(layer_ids)
    lids = jnp.asarray(layer_ids + [-1], dtype=jnp.int32)   # sentinel -> final flush

    tgt_col = jnp.asarray(target, dtype=jnp.int32).reshape(n, 1)
    t10_row = jnp.asarray(args.T10, dtype=jnp.int32).reshape(1, n)

    kern = functools.partial(
        _fused_local_loss_kernel,
        filter_target=int(args.filter_target),
        scale_c=float(args.loss_scale_C),
        scale_ssl=float(args.loss_scale_ssl),
        mxu_dtype=mxu_dtype,
    )

    # VMEM budget: double-buffered bf16 tiles + resident operands + O(N^2) scratch.
    isz = jnp.dtype(stream_dtype).itemsize
    est = (2 * 2 * n * tk * isz              # a/b tiles, double-buffered
           + 2 * n * num_classes * 4         # logits
           + 3 * n * n * 4                   # gram accumulators
           + 8 * n * 4 + 8 * 1024)           # diag/mask/target/T10/out + slack
    vmem_limit = int(min(48 * 1024 * 1024, max(32 * 1024 * 1024, 2 * est)))

    out = pl.pallas_call(
        kern,
        out_shape=jax.ShapeDtypeStruct((2, 128), jnp.float32),
        grid_spec=pltpu.PrefetchScalarGridSpec(
            num_scalar_prefetch=1,
            grid=(num_k,),
            in_specs=[
                pl.BlockSpec((n, tk), lambda k, *_: (0, k)),            # A tile
                pl.BlockSpec((n, tk), lambda k, *_: (0, k)),            # B tile
                pl.BlockSpec((n, num_classes), lambda k, *_: (0, 0)),   # logits
                pl.BlockSpec((n, 1), lambda k, *_: (0, 0)),             # target
                pl.BlockSpec((1, n), lambda k, *_: (0, 0)),             # T10
            ],
            out_specs=pl.BlockSpec((2, 128), lambda k, *_: (0, 0)),
            scratch_shapes=[
                pltpu.VMEM((n, n), jnp.float32),   # gram_aa
                pltpu.VMEM((n, n), jnp.float32),   # gram_ab
                pltpu.VMEM((n, n), jnp.float32),   # gram_bb
                pltpu.VMEM((n, 1), jnp.float32),   # diag_a
                pltpu.VMEM((n, 1), jnp.float32),   # diag_b
                pltpu.VMEM((n, 1), jnp.float32),   # mask
                pltpu.VMEM((1, 1), jnp.float32),   # running loss
            ],
        ),
        compiler_params=pltpu.CompilerParams(
            dimension_semantics=("arbitrary",),     # K is a reduction axis
            vmem_limit_bytes=vmem_limit,
        ),
    )(lids, a_cat, b_cat, predictions.astype(jnp.float32), tgt_col, t10_row)
    return out[0, 0], out[1, 0]


# ----------------------------------------------------------------------------
# Standalone cross-entropy kernel (method='final')
# ----------------------------------------------------------------------------
def _ce_kernel(pred_ref, tgt_ref, out_ref):
    pred = pred_ref[...]
    n, num_classes = pred.shape
    cls = jax.lax.broadcasted_iota(jnp.int32, (n, num_classes), 1)
    onehot = (cls == jnp.broadcast_to(tgt_ref[...], (n, num_classes))
              ).astype(jnp.float32)
    mx = jnp.max(pred, axis=1, keepdims=True)
    lse = jnp.log(jnp.sum(jnp.exp(pred - mx), axis=1, keepdims=True)) + mx
    picked = jnp.sum(onehot * pred, axis=1, keepdims=True)
    out_ref[...] = jnp.broadcast_to(jnp.mean(lse - picked), (1, 128))


def cross_entropy_loss(logits, target):
    n, _ = logits.shape
    tgt_col = jnp.asarray(target, dtype=jnp.int32).reshape(n, 1)
    vmem = pl.BlockSpec(memory_space=pltpu.MemorySpace.VMEM)
    out = pl.pallas_call(
        _ce_kernel,
        out_shape=jax.ShapeDtypeStruct((1, 128), jnp.float32),
        in_specs=[vmem, vmem],
        out_specs=vmem,
    )(logits.astype(jnp.float32), tgt_col)
    return out[0, 0]


# ----------------------------------------------------------------------------
# Module wrapper
# ----------------------------------------------------------------------------
class C2LossClassificationCNNTest:
    """JAX/Pallas port of C2Loss_Classification_CNN_Test."""

    def __init__(self, args, *, block_k=4096, stream_dtype=jnp.bfloat16,
                 mxu_dtype=jnp.bfloat16):
        self.args = args
        self.method = args.method
        self.block_k = block_k
        self.stream_dtype = stream_dtype
        self.mxu_dtype = mxu_dtype

    def __call__(self, activations, signals, target, method="final"):
        logits = activations[-1]
        if method == "local":
            a_list, b_list = [], []
            for act, sig in zip(activations[:-1], signals[:-1]):
                # The reference's 2D<->4D .view() shuffling is a value no-op once
                # both tensors are flattened row-major to [N, -1].
                a_list.append(act.reshape(act.shape[0], -1))
                b_list.append(sig.reshape(sig.shape[0], -1))
            if not a_list:
                ce = cross_entropy_loss(logits, target)
                return ce, ce
            total, ce = fused_local_loss(
                self.args, a_list, b_list, target, logits,
                block_k=self.block_k, stream_dtype=self.stream_dtype,
                mxu_dtype=self.mxu_dtype)
            # NOTE: `ce` is a device scalar; the reference's `.item()` host sync
            # is deferred to the caller to keep dispatch asynchronous.
            return total, ce
        elif method == "final":
            loss = cross_entropy_loss(logits, target)
            return loss, loss


class Args:
    pass


# ----------------------------------------------------------------------------
# Demo
# ----------------------------------------------------------------------------
if __name__ == "__main__":
    key = jax.random.PRNGKey(0)
    k1, k2, k3, k4, k5, k6, k7 = jax.random.split(key, 7)

    N, C1, H, W = 8, 4, 8, 8          # 4D activation (NCHW)
    F2 = 128                          # 2D activation features
    NUM_CLASSES = 10

    # "activations" = [conv feature map, fc feature, final logits]
    act1 = jax.random.normal(k1, (N, C1, H, W), dtype=jnp.float32)
    act2 = jax.random.normal(k2, (N, F2), dtype=jnp.float32)
    logits = jax.random.normal(k3, (N, NUM_CLASSES), dtype=jnp.float32)
    activations = [act1, act2, logits]

    # "signals" = local targets
    sig1 = jax.random.normal(k4, (N, C1 * H * W), dtype=jnp.float32)
    sig2 = jax.random.normal(k5, (N, F2), dtype=jnp.float32)
    sig_final = jnp.zeros((N, NUM_CLASSES), dtype=jnp.float32)  # unused
    signals = [sig1, sig2, sig_final]

    target = jax.random.randint(k6, (N,), 0, NUM_CLASSES, dtype=jnp.int32)

    args = Args()
    args.filter_target = 1
    args.loss_scale_C = 1.0
    args.loss_scale_ssl = 0.5
    args.T10 = jax.random.randint(k7, (N,), 0, NUM_CLASSES, dtype=jnp.int32)
    args.method = "local"

    # small K tile so the demo exercises multi-tile accumulation and the
    # layer-boundary flush logic
    loss_mod = C2LossClassificationCNNTest(args, block_k=128)
    total_loss, ce_loss = loss_mod(activations, signals, target, method="local")
    final_loss, _ = loss_mod(activations, signals, target, method="final")
    jax.block_until_ready((total_loss, ce_loss, final_loss))

    assert bool(jnp.isfinite(total_loss)) and bool(jnp.isfinite(ce_loss))
    assert bool(jnp.isfinite(final_loss))
    print("KERNEL_OK")
</pallas_src>

<mosaic_0001>
module attributes {stable_mosaic.version = 11 : i64} {
  func.func @_fused_local_loss_kernel(%arg0: i32, %arg1: memref<4xi32, #tpu.memory_space<smem>>, %arg2: memref<8x128xbf16, #tpu.memory_space<vmem>>, %arg3: memref<8x128xbf16, #tpu.memory_space<vmem>>, %arg4: memref<8x10xf32, #tpu.memory_space<vmem>>, %arg5: memref<8x1xi32, #tpu.memory_space<vmem>>, %arg6: memref<1x8xi32, #tpu.memory_space<vmem>>, %arg7: memref<2x128xf32, #tpu.memory_space<vmem>>, %arg8: memref<8x8xf32, #tpu.memory_space<vmem>>, %arg9: memref<8x8xf32, #tpu.memory_space<vmem>>, %arg10: memref<8x8xf32, #tpu.memory_space<vmem>>, %arg11: memref<8x1xf32, #tpu.memory_space<vmem>>, %arg12: memref<8x1xf32, #tpu.memory_space<vmem>>, %arg13: memref<8x1xf32, #tpu.memory_space<vmem>>, %arg14: memref<1x1xf32, #tpu.memory_space<vmem>>) attributes {dimension_semantics = [#tpu.dimension_semantics<arbitrary>], iteration_bounds = array<i64: 3>, scalar_prefetch = 1 : i64, scratch_operands = 7 : i64, tpu.core_type = #tpu.core_type<tc>, window_params = [{transform_indices = @transform_0, window_bounds = array<i64: 8, 128>}, {transform_indices = @transform_1, window_bounds = array<i64: 8, 128>}, {pipeline_mode = #tpu.pipeline_mode<synchronous>, transform_indices = @transform_2, window_bounds = array<i64: 8, 10>}, {pipeline_mode = #tpu.pipeline_mode<synchronous>, transform_indices = @transform_3, window_bounds = array<i64: 8, 1>}, {pipeline_mode = #tpu.pipeline_mode<synchronous>, transform_indices = @transform_4, window_bounds = array<i64: 1, 8>}, {pipeline_mode = #tpu.pipeline_mode<synchronous>, transform_indices = @transform_5, window_bounds = array<i64: 2, 128>}]} {
    %c0_i32 = arith.constant 0 : i32
    %0 = arith.cmpi eq, %arg0, %c0_i32 : i32
    %1 = arith.extui %0 : i1 to i32
    %c0_i32_0 = arith.constant 0 : i32
    %2 = arith.cmpi ne, %1, %c0_i32_0 : i32
    scf.if %2 {
      %cst_31 = arith.constant 0.000000e+00 : f32
      %43 = vector.broadcast %cst_31 : f32 to vector<8x8xf32>
      %c0_32 = arith.constant 0 : index
      %c0_33 = arith.constant 0 : index
      %44 = vector.load %arg8[%c0_32, %c0_33] : memref<8x8xf32, #tpu.memory_space<vmem>>, vector<8x8xf32>
      tpu.vector_store %arg8[%c0_32, %c0_33], %43 {strides = array<i32>} : memref<8x8xf32, #tpu.memory_space<vmem>>, vector<8x8xf32>,
      %cst_34 = arith.constant 0.000000e+00 : f32
      %45 = vector.broadcast %cst_34 : f32 to vector<8x8xf32>
      %c0_35 = arith.constant 0 : index
      %c0_36 = arith.constant 0 : index
      %46 = vector.load %arg9[%c0_35, %c0_36] : memref<8x8xf32, #tpu.memory_space<vmem>>, vector<8x8xf32>
      tpu.vector_store %arg9[%c0_35, %c0_36], %45 {strides = array<i32>} : memref<8x8xf32, #tpu.memory_space<vmem>>, vector<8x8xf32>,
      %cst_37 = arith.constant 0.000000e+00 : f32
      %47 = vector.broadcast %cst_37 : f32 to vector<8x8xf32>
      %c0_38 = arith.constant 0 : index
      %c0_39 = arith.constant 0 : index
      %48 = vector.load %arg10[%c0_38, %c0_39] : memref<8x8xf32, #tpu.memory_space<vmem>>, vector<8x8xf32>
      tpu.vector_store %arg10[%c0_38, %c0_39], %47 {strides = array<i32>} : memref<8x8xf32, #tpu.memory_space<vmem>>, vector<8x8xf32>,
      %cst_40 = arith.constant 0.000000e+00 : f32
      %49 = vector.broadcast %cst_40 : f32 to vector<8x1xf32>
      %c0_41 = arith.constant 0 : index
      %c0_42 = arith.constant 0 : index
      %50 = vector.load %arg11[%c0_41, %c0_42] : memref<8x1xf32, #tpu.memory_space<vmem>>, vector<8x1xf32>
      tpu.vector_store %arg11[%c0_41, %c0_42], %49 {strides = array<i32>} : memref<8x1xf32, #tpu.memory_space<vmem>>, vector<8x1xf32>,
      %cst_43 = arith.constant 0.000000e+00 : f32
      %51 = vector.broadcast %cst_43 : f32 to vector<8x1xf32>
      %c0_44 = arith.constant 0 : index
      %c0_45 = arith.constant 0 : index
      %52 = vector.load %arg12[%c0_44, %c0_45] : memref<8x1xf32, #tpu.memory_space<vmem>>, vector<8x1xf32>
      tpu.vector_store %arg12[%c0_44, %c0_45], %51 {strides = array<i32>} : memref<8x1xf32, #tpu.memory_space<vmem>>, vector<8x1xf32>,
      %cst_46 = arith.constant 0.000000e+00 : f32
      %53 = vector.broadcast %cst_46 : f32 to vector<1x1xf32>
      %c0_47 = arith.constant 0 : index
      %c0_48 = arith.constant 0 : index
      %54 = vector.load %arg14[%c0_47, %c0_48] : memref<1x1xf32, #tpu.memory_space<vmem>>, vector<1x1xf32>
      tpu.vector_store %arg14[%c0_47, %c0_48], %53 {strides = array<i32>} : memref<1x1xf32, #tpu.memory_space<vmem>>, vector<1x1xf32>,
      %c0_49 = arith.constant 0 : index
      %c0_50 = arith.constant 0 : index
      %55 = vector.load %arg4[%c0_49, %c0_50] : memref<8x10xf32, #tpu.memory_space<vmem>>, vector<8x10xf32>
      %56 = tpu.iota {dimensions = array<i32: 1>} : vector<8x10xi32>
      %c0_51 = arith.constant 0 : index
      %c0_52 = arith.constant 0 : index
      %57 = vector.load %arg5[%c0_51, %c0_52] : memref<8x1xi32, #tpu.memory_space<vmem>>, vector<8x1xi32>
      %58 = vector.shape_cast %57 : vector<8x1xi32> to vector<8x1xi32>
      %59 = vector.broadcast %58 : vector<8x1xi32> to vector<8x10xi32>
      %60 = arith.cmpi eq, %56, %59 : vector<8x10xi32>
      %61 = arith.extui %60 : vector<8x10xi1> to vector<8x10xi32>
      %62 = arith.sitofp %61 : vector<8x10xi32> to vector<8x10xf32>
      %cst_53 = arith.constant dense<0xFF800000> : vector<8xf32>
      %63 = vector.multi_reduction <maximumf>, %55, %cst_53 [1] : vector<8x10xf32> to vector<8xf32>
      %64 = vector.shape_cast %63 : vector<8xf32> to vector<8x1xf32>
      %65 = vector.broadcast %64 : vector<8x1xf32> to vector<8x10xf32>
      %66 = arith.subf %55, %65 : vector<8x10xf32>
      %67 = math.exp %66 : vector<8x10xf32>
      %cst_54 = arith.constant dense<0.000000e+00> : vector<8xf32>
      %68 = vector.multi_reduction <add>, %67, %cst_54 [1] : vector<8x10xf32> to vector<8xf32>
      %69 = vector.shape_cast %68 : vector<8xf32> to vector<8x1xf32>
      %70 = vector.broadcast %69 : vector<8x1xf32> to vector<8x10xf32>
      %71 = arith.divf %67, %70 : vector<8x10xf32>
      %72 = arith.subf %71, %62 : vector<8x10xf32>
      %73 = math.absf %72 : vector<8x10xf32>
      %cst_55 = arith.constant 1.000000e-01 : f32
      %74 = vector.broadcast %cst_55 : f32 to vector<8x10xf32>
      %75 = arith.cmpf olt, %73, %74 : vector<8x10xf32>
      %cst_56 = arith.constant 1.000000e+00 : f32
      %cst_57 = arith.constant 0.000000e+00 : f32
      %76 = vector.broadcast %cst_56 : f32 to vector<8x10xf32>
      %77 = vector.broadcast %cst_57 : f32 to vector<8x10xf32>
      %78 = arith.select %75, %76, %77 : vector<8x10xi1>, vector<8x10xf32>
      %79 = arith.mulf %78, %62 : vector<8x10xf32>
      %cst_58 = arith.constant dense<0.000000e+00> : vector<8xf32>
      %80 = vector.multi_reduction <add>, %79, %cst_58 [1] : vector<8x10xf32> to vector<8xf32>
      %81 = vector.shape_cast %80 : vector<8xf32> to vector<8x1xf32>
      %cst_59 = arith.constant 1.000000e+00 : f32
      %82 = vector.broadcast %cst_59 : f32 to vector<8x1xf32>
      %83 = arith.subf %82, %81 : vector<8x1xf32>
      %c0_60 = arith.constant 0 : index
      %c0_61 = arith.constant 0 : index
      %84 = vector.load %arg13[%c0_60, %c0_61] : memref<8x1xf32, #tpu.memory_space<vmem>>, vector<8x1xf32>
      tpu.vector_store %arg13[%c0_60, %c0_61], %83 {strides = array<i32>} : memref<8x1xf32, #tpu.memory_space<vmem>>, vector<8x1xf32>,
    } else {
    }
    %c0 = arith.constant 0 : index
    %c0_1 = arith.constant 0 : index
    %3 = vector.load %arg2[%c0, %c0_1] : memref<8x128xbf16, #tpu.memory_space<vmem>>, vector<8x128xbf16>
    %c0_2 = arith.constant 0 : index
    %c0_3 = arith.constant 0 : index
    %4 = vector.load %arg13[%c0_2, %c0_3] : memref<8x1xf32, #tpu.memory_space<vmem>>, vector<8x1xf32>
    %5 = arith.truncf %4 : vector<8x1xf32> to vector<8x1xbf16>
    %6 = vector.broadcast %5 : vector<8x1xbf16> to vector<8x128xbf16>
    %7 = arith.mulf %3, %6 : vector<8x128xbf16>
    %c0_4 = arith.constant 0 : index
    %c0_5 = arith.constant 0 : index
    %8 = vector.load %arg3[%c0_4, %c0_5] : memref<8x128xbf16, #tpu.memory_space<vmem>>, vector<8x128xbf16>
    %c0_6 = arith.constant 0 : index
    %c0_7 = arith.constant 0 : index
    %9 = vector.load %arg8[%c0_6, %c0_7] : memref<8x8xf32, #tpu.memory_space<vmem>>, vector<8x8xf32>
    %cst = arith.constant dense<0.000000e+00> : vector<8x8xf32>
    %10 = tpu.matmul %7, %7, %cst {dimension_numbers = #tpu.dot_dimension_numbers<[1], [1], [0], [0], [0, 0, 1, 0], [], []>} : vector<8x128xbf16>, vector<8x128xbf16>, vector<8x8xf32> -> vector<8x8xf32>
    %11 = arith.addf %9, %10 : vector<8x8xf32>
    %c0_8 = arith.constant 0 : index
    %c0_9 = arith.constant 0 : index
    %12 = vector.load %arg8[%c0_8, %c0_9] : memref<8x8xf32, #tpu.memory_space<vmem>>, vector<8x8xf32>
    tpu.vector_store %arg8[%c0_8, %c0_9], %11 {strides = array<i32>} : memref<8x8xf32, #tpu.memory_space<vmem>>, vector<8x8xf32>,
    %c0_10 = arith.constant 0 : index
    %c0_11 = arith.constant 0 : index
    %13 = vector.load %arg9[%c0_10, %c0_11] : memref<8x8xf32, #tpu.memory_space<vmem>>, vector<8x8xf32>
    %cst_12 = arith.constant dense<0.000000e+00> : vector<8x8xf32>
    %14 = tpu.matmul %7, %8, %cst_12 {dimension_numbers = #tpu.dot_dimension_numbers<[1], [1], [0], [0], [0, 0, 1, 0], [], []>} : vector<8x128xbf16>, vector<8x128xbf16>, vector<8x8xf32> -> vector<8x8xf32>
    %15 = arith.addf %13, %14 : vector<8x8xf32>
    %c0_13 = arith.constant 0 : index
    %c0_14 = arith.constant 0 : index
    %16 = vector.load %arg9[%c0_13, %c0_14] : memref<8x8xf32, #tpu.memory_space<vmem>>, vector<8x8xf32>
    tpu.vector_store %arg9[%c0_13, %c0_14], %15 {strides = array<i32>} : memref<8x8xf32, #tpu.memory_space<vmem>>, vector<8x8xf32>,
    %c0_15 = arith.constant 0 : index
    %c0_16 = arith.constant 0 : index
    %17 = vector.load %arg10[%c0_15, %c0_16] : memref<8x8xf32, #tpu.memory_space<vmem>>, vector<8x8xf32>
    %cst_17 = arith.constant dense<0.000000e+00> : vector<8x8xf32>
    %18 = tpu.matmul %8, %8, %cst_17 {dimension_numbers = #tpu.dot_dimension_numbers<[1], [1], [0], [0], [0, 0, 1, 0], [], []>} : vector<8x128xbf16>, vector<8x128xbf16>, vector<8x8xf32> -> vector<8x8xf32>
    %19 = arith.addf %17, %18 : vector<8x8xf32>
    %c0_18 = arith.constant 0 : index
    %c0_19 = arith.constant 0 : index
    %20 = vector.load %arg10[%c0_18, %c0_19] : memref<8x8xf32, #tpu.memory_space<vmem>>, vector<8x8xf32>
    tpu.vector_store %arg10[%c0_18, %c0_19], %19 {strides = array<i32>} : memref<8x8xf32, #tpu.memory_space<vmem>>, vector<8x8xf32>,
    %21 = arith.extf %7 : vector<8x128xbf16> to vector<8x128xf32>
    %22 = arith.extf %8 : vector<8x128xbf16> to vector<8x128xf32>
    %c0_20 = arith.constant 0 : index
    %c0_21 = arith.constant 0 : index
    %23 = vector.load %arg11[%c0_20, %c0_21] : memref<8x1xf32, #tpu.memory_space<vmem>>, vector<8x1xf32>
    %24 = arith.mulf %21, %21 : vector<8x128xf32>
    %cst_22 = arith.constant dense<0.000000e+00> : vector<8xf32>
    %25 = vector.multi_reduction <add>, %24, %cst_22 [1] : vector<8x128xf32> to vector<8xf32>
    %26 = vector.shape_cast %25 : vector<8xf32> to vector<8x1xf32>
    %27 = arith.addf %23, %26 : vector<8x1xf32>
    %c0_23 = arith.constant 0 : index
    %c0_24 = arith.constant 0 : index
    %28 = vector.load %arg11[%c0_23, %c0_24] : memref<8x1xf32, #tpu.memory_space<vmem>>, vector<8x1xf32>
    tpu.vector_store %arg11[%c0_23, %c0_24], %27 {strides = array<i32>} : memref<8x1xf32, #tpu.memory_space<vmem>>, vector<8x1xf32>,
    %c0_25 = arith.constant 0 : index
    %c0_26 = arith.constant 0 : index
    %29 = vector.load %arg12[%c0_25, %c0_26] : memref<8x1xf32, #tpu.memory_space<vmem>>, vector<8x1xf32>
    %30 = arith.mulf %22, %22 : vector<8x128xf32>
    %cst_27 = arith.constant dense<0.000000e+00> : vector<8xf32>
    %31 = vector.multi_reduction <add>, %30, %cst_27 [1] : vector<8x128xf32> to vector<8xf32>
    %32 = vector.shape_cast %31 : vector<8xf32> to vector<8x1xf32>
    %33 = arith.addf %29, %32 : vector<8x1xf32>
    %c0_28 = arith.constant 0 : index
    %c0_29 = arith.constant 0 : index
    %34 = vector.load %arg12[%c0_28, %c0_29] : memref<8x1xf32, #tpu.memory_space<vmem>>, vector<8x1xf32>
    tpu.vector_store %arg12[%c0_28, %c0_29], %33 {strides = array<i32>} : memref<8x1xf32, #tpu.memory_space<vmem>>, vector<8x1xf32>,
    %c1_i32 = arith.constant 1 : i32
    %35 = arith.addi %arg0, %c1_i32 : i32
    %36 = arith.index_cast %35 : i32 to index
    %37 = memref.load %arg1[%36] : memref<4xi32, #tpu.memory_space<smem>>
    %38 = arith.index_cast %arg0 : i32 to index
    %39 = memref.load %arg1[%38] : memref<4xi32, #tpu.memory_space<smem>>
    %40 = arith.cmpi ne, %37, %39 : i32
    %41 = arith.extui %40 : i1 to i32
    %c0_i32_30 = arith.constant 0 : i32
    %42 = arith.cmpi ne, %41, %c0_i32_30 : i32
    scf.if %42 {
      %43 = tpu.iota {dimensions = array<i32: 0>} : vector<8x8xi32>
      %44 = tpu.iota {dimensions = array<i32: 1>} : vector<8x8xi32>
      %45 = arith.cmpi eq, %43, %44 : vector<8x8xi32>
      %46 = arith.extui %45 : vector<8x8xi1> to vector<8x8xi32>
      %47 = arith.sitofp %46 : vector<8x8xi32> to vector<8x8xf32>
      %c0_31 = arith.constant 0 : index
      %c0_32 = arith.constant 0 : index
      %48 = vector.load %arg11[%c0_31, %c0_32] : memref<8x1xf32, #tpu.memory_space<vmem>>, vector<8x1xf32>
      %49 = math.sqrt %48 : vector<8x1xf32>
      %cst_33 = arith.constant 9.99999993E-9 : f32
      %50 = vector.broadcast %cst_33 : f32 to vector<8x1xf32>
      %51 = arith.addf %49, %50 : vector<8x1xf32>
      %c0_34 = arith.constant 0 : index
      %c0_35 = arith.constant 0 : index
      %52 = vector.load %arg12[%c0_34, %c0_35] : memref<8x1xf32, #tpu.memory_space<vmem>>, vector<8x1xf32>
      %53 = math.sqrt %52 : vector<8x1xf32>
      %cst_36 = arith.constant 9.99999993E-9 : f32
      %54 = vector.broadcast %cst_36 : f32 to vector<8x1xf32>
      %55 = arith.addf %53, %54 : vector<8x1xf32>
      %56 = vector.shape_cast %51 : vector<8x1xf32> to vector<8x1xf32>
      %57 = vector.broadcast %56 : vector<8x1xf32> to vector<8x8xf32>
      %cst_37 = arith.constant 0.000000e+00 : f32
      %58 = vector.broadcast %cst_37 : f32 to vector<8x8xf32>
      %59 = arith.select %45, %57, %58 : vector<8x8xi1>, vector<8x8xf32>
      %cst_38 = arith.constant dense<0.000000e+00> : vector<8xf32>
      %60 = vector.multi_reduction <add>, %59, %cst_38 [0] : vector<8x8xf32> to vector<8xf32>
      %61 = vector.shape_cast %60 : vector<8xf32> to vector<1x8xf32>
      %62 = vector.shape_cast %55 : vector<8x1xf32> to vector<8x1xf32>
      %63 = vector.broadcast %62 : vector<8x1xf32> to vector<8x8xf32>
      %cst_39 = arith.constant 0.000000e+00 : f32
      %64 = vector.broadcast %cst_39 : f32 to vector<8x8xf32>
      %65 = arith.select %45, %63, %64 : vector<8x8xi1>, vector<8x8xf32>
      %cst_40 = arith.constant dense<0.000000e+00> : vector<8xf32>
      %66 = vector.multi_reduction <add>, %65, %cst_40 [0] : vector<8x8xf32> to vector<8xf32>
      %67 = vector.shape_cast %66 : vector<8xf32> to vector<1x8xf32>
      %c0_41 = arith.constant 0 : index
      %c0_42 = arith.constant 0 : index
      %68 = vector.load %arg9[%c0_41, %c0_42] : memref<8x8xf32, #tpu.memory_space<vmem>>, vector<8x8xf32>
      %69 = vector.broadcast %51 : vector<8x1xf32> to vector<8x8xf32>
      %70 = vector.broadcast %67 : vector<1x8xf32> to vector<8x8xf32>
      %71 = arith.mulf %69, %70 : vector<8x8xf32>
      %72 = arith.divf %68, %71 : vector<8x8xf32>
      %c0_43 = arith.constant 0 : index
      %c0_44 = arith.constant 0 : index
      %73 = vector.load %arg8[%c0_43, %c0_44] : memref<8x8xf32, #tpu.memory_space<vmem>>, vector<8x8xf32>
      %74 = vector.broadcast %51 : vector<8x1xf32> to vector<8x8xf32>
      %75 = vector.broadcast %61 : vector<1x8xf32> to vector<8x8xf32>
      %76 = arith.mulf %74, %75 : vector<8x8xf32>
      %77 = arith.divf %73, %76 : vector<8x8xf32>
      %c0_45 = arith.constant 0 : index
      %c0_46 = arith.constant 0 : index
      %78 = vector.load %arg10[%c0_45, %c0_46] : memref<8x8xf32, #tpu.memory_space<vmem>>, vector<8x8xf32>
      %79 = vector.broadcast %55 : vector<8x1xf32> to vector<8x8xf32>
      %80 = vector.broadcast %67 : vector<1x8xf32> to vector<8x8xf32>
      %81 = arith.mulf %79, %80 : vector<8x8xf32>
      %82 = arith.divf %78, %81 : vector<8x8xf32>
      %c0_47 = arith.constant 0 : index
      %c0_48 = arith.constant 0 : index
      %83 = vector.load %arg5[%c0_47, %c0_48] : memref<8x1xi32, #tpu.memory_space<vmem>>, vector<8x1xi32>
      %84 = vector.shape_cast %83 : vector<8x1xi32> to vector<8x1xi32>
      %85 = vector.broadcast %84 : vector<8x1xi32> to vector<8x8xi32>
      %c0_49 = arith.constant 0 : index
      %c0_50 = arith.constant 0 : index
      %86 = vector.load %arg6[%c0_49, %c0_50] : memref<1x8xi32, #tpu.memory_space<vmem>>, vector<1x8xi32>
      %87 = vector.shape_cast %86 : vector<1x8xi32> to vector<1x8xi32>
      %88 = vector.broadcast %87 : vector<1x8xi32> to vector<8x8xi32>
      %89 = arith.cmpi eq, %85, %88 : vector<8x8xi32>
      %90 = arith.extui %89 : vector<8x8xi1> to vector<8x8xi32>
      %91 = arith.sitofp %90 : vector<8x8xi32> to vector<8x8xf32>
      %92 = arith.subf %72, %91 : vector<8x8xf32>
      %93 = arith.mulf %92, %92 : vector<8x8xf32>
      %94 = vector.shape_cast %93 : vector<8x8xf32> to vector<1x8x8xf32>
      %cst_51 = arith.constant dense<0.000000e+00> : vector<1xf32>
      %95 = vector.multi_reduction <add>, %94, %cst_51 [1, 2] : vector<1x8x8xf32> to vector<1xf32>
      %96 = vector.shape_cast %95 : vector<1xf32> to vector<1x1x1xf32>
      %97 = vector.extract %96[0, 0, 0] : f32 from vector<1x1x1xf32>
      %cst_52 = arith.constant 6.400000e+01 : f32
      %98 = arith.divf %97, %cst_52 : f32
      %cst_53 = arith.constant 1.000000e+00 : f32
      %99 = arith.mulf %98, %cst_53 : f32
      %100 = arith.subf %77, %47 : vector<8x8xf32>
      %101 = arith.mulf %100, %100 : vector<8x8xf32>
      %102 = vector.shape_cast %101 : vector<8x8xf32> to vector<1x8x8xf32>
      %cst_54 = arith.constant dense<0.000000e+00> : vector<1xf32>
      %103 = vector.multi_reduction <add>, %102, %cst_54 [1, 2] : vector<1x8x8xf32> to vector<1xf32>
      %104 = vector.shape_cast %103 : vector<1xf32> to vector<1x1x1xf32>
      %105 = vector.extract %104[0, 0, 0] : f32 from vector<1x1x1xf32>
      %cst_55 = arith.constant 6.400000e+01 : f32
      %106 = arith.divf %105, %cst_55 : f32
      %cst_56 = arith.constant 5.000000e-01 : f32
      %107 = arith.mulf %106, %cst_56 : f32
      %108 = arith.addf %99, %107 : f32
      %109 = arith.subf %82, %47 : vector<8x8xf32>
      %110 = arith.mulf %109, %109 : vector<8x8xf32>
      %111 = vector.shape_cast %110 : vector<8x8xf32> to vector<1x8x8xf32>
      %cst_57 = arith.constant dense<0.000000e+00> : vector<1xf32>
      %112 = vector.multi_reduction <add>, %111, %cst_57 [1, 2] : vector<1x8x8xf32> to vector<1xf32>
      %113 = vector.shape_cast %112 : vector<1xf32> to vector<1x1x1xf32>
      %114 = vector.extract %113[0, 0, 0] : f32 from vector<1x1x1xf32>
      %cst_58 = arith.constant 6.400000e+01 : f32
      %115 = arith.divf %114, %cst_58 : f32
      %cst_59 = arith.constant 5.000000e-01 : f32
      %116 = arith.mulf %115, %cst_59 : f32
      %117 = arith.addf %108, %116 : f32
      %c0_60 = arith.constant 0 : index
      %c0_61 = arith.constant 0 : index
      %118 = vector.load %arg14[%c0_60, %c0_61] : memref<1x1xf32, #tpu.memory_space<vmem>>, vector<1x1xf32>
      %119 = vector.broadcast %117 : f32 to vector<1x1xf32>
      %120 = arith.addf %118, %119 : vector<1x1xf32>
      %c0_62 = arith.constant 0 : index
      %c0_63 = arith.constant 0 : index
      %121 = vector.load %arg14[%c0_62, %c0_63] : memref<1x1xf32, #tpu.memory_space<vmem>>, vector<1x1xf32>
      tpu.vector_store %arg14[%c0_62, %c0_63], %120 {strides = array<i32>} : memref<1x1xf32, #tpu.memory_space<vmem>>, vector<1x1xf32>,
      %cst_64 = arith.constant 0.000000e+00 : f32
      %122 = vector.broadcast %cst_64 : f32 to vector<8x8xf32>
      %c0_65 = arith.constant 0 : index
      %c0_66 = arith.constant 0 : index
      %123 = vector.load %arg8[%c0_65, %c0_66] : memref<8x8xf32, #tpu.memory_space<vmem>>, vector<8x8xf32>
      tpu.vector_store %arg8[%c0_65, %c0_66], %122 {strides = array<i32>} : memref<8x8xf32, #tpu.memory_space<vmem>>, vector<8x8xf32>,
      %cst_67 = arith.constant 0.000000e+00 : f32
      %124 = vector.broadcast %cst_67 : f32 to vector<8x8xf32>
      %c0_68 = arith.constant 0 : index
      %c0_69 = arith.constant 0 : index
      %125 = vector.load %arg9[%c0_68, %c0_69] : memref<8x8xf32, #tpu.memory_space<vmem>>, vector<8x8xf32>
      tpu.vector_store %arg9[%c0_68, %c0_69], %124 {strides = array<i32>} : memref<8x8xf32, #tpu.memory_space<vmem>>, vector<8x8xf32>,
      %cst_70 = arith.constant 0.000000e+00 : f32
      %126 = vector.broadcast %cst_70 : f32 to vector<8x8xf32>
      %c0_71 = arith.constant 0 : index
      %c0_72 = arith.constant 0 : index
      %127 = vector.load %arg10[%c0_71, %c0_72] : memref<8x8xf32, #tpu.memory_space<vmem>>, vector<8x8xf32>
      tpu.vector_store %arg10[%c0_71, %c0_72], %126 {strides = array<i32>} : memref<8x8xf32, #tpu.memory_space<vmem>>, vector<8x8xf32>,
      %cst_73 = arith.constant 0.000000e+00 : f32
      %128 = vector.broadcast %cst_73 : f32 to vector<8x1xf32>
      %c0_74 = arith.constant 0 : index
      %c0_75 = arith.constant 0 : index
      %129 = vector.load %arg11[%c0_74, %c0_75] : memref<8x1xf32, #tpu.memory_space<vmem>>, vector<8x1xf32>
      tpu.vector_store %arg11[%c0_74, %c0_75], %128 {strides = array<i32>} : memref<8x1xf32, #tpu.memory_space<vmem>>, vector<8x1xf32>,
      %cst_76 = arith.constant 0.000000e+00 : f32
      %130 = vector.broadcast %cst_76 : f32 to vector<8x1xf32>
      %c0_77 = arith.constant 0 : index
      %c0_78 = arith.constant 0 : index
      %131 = vector.load %arg12[%c0_77, %c0_78] : memref<8x1xf32, #tpu.memory_space<vmem>>, vector<8x1xf32>
      tpu.vector_store %arg12[%c0_77, %c0_78], %130 {strides = array<i32>} : memref<8x1xf32, #tpu.memory_space<vmem>>, vector<8x1xf32>,
      %c2_i32 = arith.constant 2 : i32
      %132 = arith.cmpi eq, %arg0, %c2_i32 : i32
      %133 = arith.extui %132 : i1 to i32
      %c0_i32_79 = arith.constant 0 : i32
      %134 = arith.cmpi ne, %133, %c0_i32_79 : i32
      scf.if %134 {
        %c0_80 = arith.constant 0 : index
        %c0_81 = arith.constant 0 : index
        %135 = vector.load %arg4[%c0_80, %c0_81] : memref<8x10xf32, #tpu.memory_space<vmem>>, vector<8x10xf32>
        %136 = tpu.iota {dimensions = array<i32: 1>} : vector<8x10xi32>
        %c0_82 = arith.constant 0 : index
        %c0_83 = arith.constant 0 : index
        %137 = vector.load %arg5[%c0_82, %c0_83] : memref<8x1xi32, #tpu.memory_space<vmem>>, vector<8x1xi32>
        %138 = vector.shape_cast %137 : vector<8x1xi32> to vector<8x1xi32>
        %139 = vector.broadcast %138 : vector<8x1xi32> to vector<8x10xi32>
        %140 = arith.cmpi eq, %136, %139 : vector<8x10xi32>
        %141 = arith.extui %140 : vector<8x10xi1> to vector<8x10xi32>
        %142 = arith.sitofp %141 : vector<8x10xi32> to vector<8x10xf32>
        %cst_84 = arith.constant dense<0xFF800000> : vector<8xf32>
        %143 = vector.multi_reduction <maximumf>, %135, %cst_84 [1] : vector<8x10xf32> to vector<8xf32>
        %144 = vector.shape_cast %143 : vector<8xf32> to vector<8x1xf32>
        %145 = vector.broadcast %144 : vector<8x1xf32> to vector<8x10xf32>
        %146 = arith.subf %135, %145 : vector<8x10xf32>
        %147 = math.exp %146 : vector<8x10xf32>
        %cst_85 = arith.constant dense<0.000000e+00> : vector<8xf32>
        %148 = vector.multi_reduction <add>, %147, %cst_85 [1] : vector<8x10xf32> to vector<8xf32>
        %149 = vector.shape_cast %148 : vector<8xf32> to vector<8x1xf32>
        %150 = math.log %149 : vector<8x1xf32>
        %151 = arith.addf %150, %144 : vector<8x1xf32>
        %152 = arith.mulf %142, %135 : vector<8x10xf32>
        %cst_86 = arith.constant dense<0.000000e+00> : vector<8xf32>
        %153 = vector.multi_reduction <add>, %152, %cst_86 [1] : vector<8x10xf32> to vector<8xf32>
        %154 = vector.shape_cast %153 : vector<8xf32> to vector<8x1xf32>
        %155 = arith.subf %151, %154 : vector<8x1xf32>
        %156 = vector.shape_cast %155 : vector<8x1xf32> to vector<1x8x1xf32>
        %cst_87 = arith.constant dense<0.000000e+00> : vector<1xf32>
        %157 = vector.multi_reduction <add>, %156, %cst_87 [1, 2] : vector<1x8x1xf32> to vector<1xf32>
        %158 = vector.shape_cast %157 : vector<1xf32> to vector<1x1x1xf32>
        %159 = vector.extract %158[0, 0, 0] : f32 from vector<1x1x1xf32>
        %cst_88 = arith.constant 8.000000e+00 : f32
        %160 = arith.divf %159, %cst_88 : f32
        %c0_89 = arith.constant 0 : index
        %c0_90 = arith.constant 0 : index
        %161 = vector.load %arg14[%c0_89, %c0_90] : memref<1x1xf32, #tpu.memory_space<vmem>>, vector<1x1xf32>
        %162 = vector.shape_cast %161 : vector<1x1xf32> to vector<1x1x1xf32>
        %cst_91 = arith.constant dense<0.000000e+00> : vector<1xf32>
        %163 = vector.multi_reduction <add>, %162, %cst_91 [1, 2] : vector<1x1x1xf32> to vector<1xf32>
        %164 = vector.shape_cast %163 : vector<1xf32> to vector<1x1x1xf32>
        %165 = vector.extract %164[0, 0, 0] : f32 from vector<1x1x1xf32>
        %166 = arith.addf %165, %160 : f32
        %167 = vector.broadcast %166 : f32 to vector<1x128xf32>
        %168 = vector.broadcast %160 : f32 to vector<1x128xf32>
        %169 = tpu.concatenate %167, %168 in 0 : vector<1x128xf32>, vector<1x128xf32> -> vector<2x128xf32>
        %c0_92 = arith.constant 0 : index
        %c0_93 = arith.constant 0 : index
        %170 = vector.load %arg7[%c0_92, %c0_93] : memref<2x128xf32, #tpu.memory_space<vmem>>, vector<2x128xf32>
        tpu.vector_store %arg7[%c0_92, %c0_93], %169 {strides = array<i32>} : memref<2x128xf32, #tpu.memory_space<vmem>>, vector<2x128xf32>,
      } else {
      }
    } else {
    }
    return
  }
  func.func @transform_0(%arg0: i32, %arg1: memref<4xi32, #tpu.memory_space<smem>>) -> (i32, i32) {
    %c0_i32 = arith.constant 0 : i32
    %c0_i32_0 = arith.constant 0 : i32
    return %c0_i32, %arg0 : i32, i32
  }
  func.func @transform_1(%arg0: i32, %arg1: memref<4xi32, #tpu.memory_space<smem>>) -> (i32, i32) {
    %c0_i32 = arith.constant 0 : i32
    %c0_i32_0 = arith.constant 0 : i32
    return %c0_i32, %arg0 : i32, i32
  }
  func.func @transform_2(%arg0: i32, %arg1: memref<4xi32, #tpu.memory_space<smem>>) -> (i32, i32) {
    %c0_i32 = arith.constant 0 : i32
    %c0_i32_0 = arith.constant 0 : i32
    %c0_i32_1 = arith.constant 0 : i32
    return %c0_i32, %c0_i32_0 : i32, i32
  }
  func.func @transform_3(%arg0: i32, %arg1: memref<4xi32, #tpu.memory_space<smem>>) -> (i32, i32) {
    %c0_i32 = arith.constant 0 : i32
    %c0_i32_0 = arith.constant 0 : i32
    %c0_i32_1 = arith.constant 0 : i32
    return %c0_i32, %c0_i32_0 : i32, i32
  }
  func.func @transform_4(%arg0: i32, %arg1: memref<4xi32, #tpu.memory_space<smem>>) -> (i32, i32) {
    %c0_i32 = arith.constant 0 : i32
    %c0_i32_0 = arith.constant 0 : i32
    %c0_i32_1 = arith.constant 0 : i32
    return %c0_i32, %c0_i32_0 : i32, i32
  }
  func.func @transform_5(%arg0: i32, %arg1: memref<4xi32, #tpu.memory_space<smem>>) -> (i32, i32) {
    %c0_i32 = arith.constant 0 : i32
    %c0_i32_0 = arith.constant 0 : i32
    %c0_i32_1 = arith.constant 0 : i32
    return %c0_i32, %c0_i32_0 : i32, i32
  }
}

</mosaic_0001>

<llo_original>
// kernel: tpu_custom_call.1
$region0: #{tpu_custom_call.1}
  #allocation0 [shape = 'u32[]', space=smem, size = 0x4, offset = 0x4, fixed_abs, tag = 'smem constant byte address 0x4 - core index']
  #allocation1 [shape = 'u32[144,128]{1,0:T(1,128)}', space=vmem, size = 0x12000, scoped, tag = 'internal scratch']
  #allocation2 [shape = 'f32[8,8]{1,0:T(8,128)}', space=vmem, size = 0x1000, scoped, tag = 'scratch operand']
  #allocation3 [shape = 'f32[8,8]{1,0:T(8,128)}', space=vmem, size = 0x1000, scoped, tag = 'scratch operand']
  #allocation4 [shape = 'f32[8,8]{1,0:T(8,128)}', space=vmem, size = 0x1000, scoped, tag = 'scratch operand']
  #allocation5 [shape = 'f32[8,1]{1,0:T(8,128)}', space=vmem, size = 0x1000, scoped, tag = 'scratch operand']
  #allocation6 [shape = 'f32[8,1]{1,0:T(8,128)}', space=vmem, size = 0x1000, scoped, tag = 'scratch operand']
  #allocation7 [shape = 'f32[8,1]{1,0:T(8,128)}', space=vmem, size = 0x1000, scoped, tag = 'scratch operand']
  #allocation8 [shape = 'f32[1,1]{1,0:T(1,128)}', space=vmem, size = 0x200, scoped, tag = 'scratch operand']
  #allocation9 [shape = 's32[1]{0}', space=sflag, size = 0x4, scoped, tag = 'scoped memory for tpu_custom_call.1']
  #allocation10 [shape = 'u8[512]{0}', space=smem, size = 0x200, scoped, tag = 'prefetched SMEM operand 0']
  %s0 = inlined_call_operand.hbm [shape: s32[4], index: 0, kind: input, shape index: {}]
  %s1 = inlined_call_operand.vmem [shape: bf16[8,384], index: 1, kind: input, shape index: {}]
  %s2 = inlined_call_operand.hbm [shape: bf16[8,384], index: 2, kind: input, shape index: {}]
  %s3 = inlined_call_operand.vmem [shape: f32[8,10], index: 3, kind: input, shape index: {}]
  %s4 = inlined_call_operand.vmem [shape: s32[8,1], index: 4, kind: input, shape index: {}]
  %s5 = inlined_call_operand.vmem [shape: s32[1,8], index: 5, kind: input, shape index: {}]
  %s6 = inlined_call_operand.hbm [shape: f32[2,128], index: 6, kind: output, shape index: {}]
  %s7 = sld [smem:[#allocation0]]
  $region69: #{tpu_custom_call.1} parent=0
    _
  %s9 = ssub.s32 1, %s7
  %s10 = scalar_select 0, %s9, %s7
  %12 = dma.hbm_to_smem %s0, 16, [#allocation10], [#allocation9]
  %13 = dma.done [#allocation9], 16
  %14 = sfence
  $region1: #{tpu_custom_call.1} parent=0
    #allocation11 [shape = 'u8[4096]{0}', space=vmem, size = 0x1000, scoped, tag = 'input window, operand 2']
    #allocation12 [shape = 's32[2]{0}', space=sflag, size = 0x8, scoped, tag = 'scoped memory for tpu_custom_call.1']
    #allocation13 [shape = 's32[2]{0}', space=sflag, size = 0x8, scoped, tag = 'scoped memory for tpu_custom_call.1']
    #allocation14 [shape = 'u8[1024]{0}', space=vmem, size = 0x400, scoped, tag = 'output window, operand 0, single buffered']
    %15 = vsyncpa [#allocation12], 0
    %s16 = scalar_lea.sflag [#allocation12], 1
    %17 = vsyncpa %s16, 0
    %18 = vsyncpa [#allocation13], 0
    loop: start=0, step=1, limit=5
    $region2: #{tpu_custom_call.1} parent=1 // loop_pre_header
      _
    $region3: #{tpu_custom_call.1} parent=1 // loop_header
      %s20 = sphi 0, %s24
      %p21 = scmp.ge.s32.totalorder %s20, 5
      %s30 = sphi 0, %s32
      %s33 = sphi 0, %s30
      %s34 = sphi 0, %s33
      %s50 = sphi 0, %s34
      %s56 = sphi 0, %s58
      %s59 = sphi 0, %s56
      %s60 = sphi 0, %s59
      %s76 = sphi 0, %s60
      %s80 = sphi 0, %s80
      %s82 = sphi 0, %s80
      %s83 = sphi 0, %s82
      %s97 = sphi 0, %s83
      %s101 = sphi 0, %s101
      %s103 = sphi 0, %s101
      %s104 = sphi 0, %s103
      %s118 = sphi 0, %s104
      %s122 = sphi 0, %s122
      %s124 = sphi 0, %s122
      %s125 = sphi 0, %s124
      %s139 = sphi 0, %s125
      %s143 = sphi 0, %s143
      %s145 = sphi 0, %s143
      %s146 = sphi 0, %s145
      %s160 = sphi 0, %s146
    $region4: #{tpu_custom_call.1} parent=1 // loop_header_branch
      %23 = sbr.rel (%p21) target = $region8
    $region5: #{tpu_custom_call.1} parent=1 // loop_body
      %s25 = ssub.s32 %s20, 1
      %s26 = ssub.s32 %s20, 2
      %s27 = sadd.s32 %s20, 1
      %s28 = ssub.s32 %s20, %s27
      %p29 = scmp.eq.s32.totalorder %s28, 0
      %s31 = sadd.s32 %s30, 1
      %s32 = scalar_select %p29, %s30, %s31
      %p35 = pneg %p29
      %p36 = scmp.eq.s32.totalorder %s20, 2
      %p37 = por %p35, %p36
      %p38 = scmp.ne.s32.totalorder %s30, %s33
      %p39 = scmp.eq.s32.totalorder %s20, 0
      %p40 = por %p38, %p39
      %p41 = scmp.ne.s32.totalorder %s30, %s33
      %p42 = scmp.eq.s32.totalorder %s25, 2
      %p43 = por %p41, %p42
      %p44 = scmp.ne.s32.totalorder %s33, %s34
      %p45 = scmp.eq.s32.totalorder %s25, 0
      %p46 = por %p44, %p45
      %p47 = scmp.ne.s32.totalorder %s33, %s34
      %p48 = scmp.eq.s32.totalorder %s26, 2
      %p49 = por %p47, %p48
      %p51 = scmp.ne.s32.totalorder %s34, %s50
      %p52 = scmp.eq.s32.totalorder %s26, 0
      %p53 = por %p51, %p52
      %s54 = ssub.s32 %s20, %s27
      %p55 = scmp.eq.s32.totalorder %s54, 0
      %s57 = sadd.s32 %s56, 1
      %s58 = scalar_select %p55, %s56, %s57
      %p61 = pneg %p55
      %p62 = scmp.eq.s32.totalorder %s20, 2
      %p63 = por %p61, %p62
      %p64 = scmp.ne.s32.totalorder %s56, %s59
      %p65 = scmp.eq.s32.totalorder %s20, 0
      %p66 = por %p64, %p65
      %p67 = scmp.ne.s32.totalorder %s56, %s59
      %p68 = scmp.eq.s32.totalorder %s25, 2
      %p69 = por %p67, %p68
      %p70 = scmp.ne.s32.totalorder %s59, %s60
      %p71 = scmp.eq.s32.totalorder %s25, 0
      %p72 = por %p70, %p71
      %p73 = scmp.ne.s32.totalorder %s59, %s60
      %p74 = scmp.eq.s32.totalorder %s26, 2
      %p75 = por %p73, %p74
      %p77 = scmp.ne.s32.totalorder %s60, %s76
      %p78 = scmp.eq.s32.totalorder %s26, 0
      %p79 = por %p77, %p78
      %s81 = sadd.s32 %s80, 1
      %p84 = scmp.eq.s32.totalorder %s20, 2
      %p85 = scmp.ne.s32.totalorder %s80, %s82
      %p86 = scmp.eq.s32.totalorder %s20, 0
      %p87 = por %p85, %p86
      %p88 = scmp.ne.s32.totalorder %s80, %s82
      %p89 = scmp.eq.s32.totalorder %s25, 2
      %p90 = por %p88, %p89
      %p91 = scmp.ne.s32.totalorder %s82, %s83
      %p92 = scmp.eq.s32.totalorder %s25, 0
      %p93 = por %p91, %p92
      %p94 = scmp.ne.s32.totalorder %s82, %s83
      %p95 = scmp.eq.s32.totalorder %s26, 2
      %p96 = por %p94, %p95
      %p98 = scmp.ne.s32.totalorder %s83, %s97
      %p99 = scmp.eq.s32.totalorder %s26, 0
      %p100 = por %p98, %p99
      %s102 = sadd.s32 %s101, 1
      %p105 = scmp.eq.s32.totalorder %s20, 2
      %p106 = scmp.ne.s32.totalorder %s101, %s103
      %p107 = scmp.eq.s32.totalorder %s20, 0
      %p108 = por %p106, %p107
      %p109 = scmp.ne.s32.totalorder %s101, %s103
      %p110 = scmp.eq.s32.totalorder %s25, 2
      %p111 = por %p109, %p110
      %p112 = scmp.ne.s32.totalorder %s103, %s104
      %p113 = scmp.eq.s32.totalorder %s25, 0
      %p114 = por %p112, %p113
      %p115 = scmp.ne.s32.totalorder %s103, %s104
      %p116 = scmp.eq.s32.totalorder %s26, 2
      %p117 = por %p115, %p116
      %p119 = scmp.ne.s32.totalorder %s104, %s118
      %p120 = scmp.eq.s32.totalorder %s26, 0
      %p121 = por %p119, %p120
      %s123 = sadd.s32 %s122, 1
      %p126 = scmp.eq.s32.totalorder %s20, 2
      %p127 = scmp.ne.s32.totalorder %s122, %s124
      %p128 = scmp.eq.s32.totalorder %s20, 0
      %p129 = por %p127, %p128
      %p130 = scmp.ne.s32.totalorder %s122, %s124
      %p131 = scmp.eq.s32.totalorder %s25, 2
      %p132 = por %p130, %p131
      %p133 = scmp.ne.s32.totalorder %s124, %s125
      %p134 = scmp.eq.s32.totalorder %s25, 0
      %p135 = por %p133, %p134
      %p136 = scmp.ne.s32.totalorder %s124, %s125
      %p137 = scmp.eq.s32.totalorder %s26, 2
      %p138 = por %p136, %p137
      %p140 = scmp.ne.s32.totalorder %s125, %s139
      %p141 = scmp.eq.s32.totalorder %s26, 0
      %p142 = por %p140, %p141
      %s144 = sadd.s32 %s143, 1
      %p147 = scmp.eq.s32.totalorder %s20, 2
      %p148 = scmp.ne.s32.totalorder %s143, %s145
      %p149 = scmp.eq.s32.totalorder %s20, 0
      %p150 = por %p148, %p149
      %p151 = scmp.ne.s32.totalorder %s143, %s145
      %p152 = scmp.eq.s32.totalorder %s25, 2
      %p153 = por %p151, %p152
      %p154 = scmp.ne.s32.totalorder %s145, %s146
      %p155 = scmp.eq.s32.totalorder %s25, 0
      %p156 = por %p154, %p155
      %p157 = scmp.ne.s32.totalorder %s145, %s146
      %p158 = scmp.eq.s32.totalorder %s26, 2
      %p159 = por %p157, %p158
      %p161 = scmp.ne.s32.totalorder %s146, %s160
      %p162 = scmp.eq.s32.totalorder %s26, 0
      %p163 = por %p161, %p162
      %p164 = scmp.le.s32.totalorder 1, %s20
      %p165 = scmp.lt.s32.totalorder %s20, 4
      %p166 = pnand %p164, %p165
      %p167 = pneg %p166
      // Predicated region
      $region9: #{tpu_custom_call.1} parent=5 // pred_check
        _
      $region10: #{tpu_custom_call.1} parent=5 // pred_check_branch
        %169 = sbr.rel (%p166) target = $region12
      $region11: #{tpu_custom_call.1} parent=5 // pred_region
        %s170 = ssub.s32 %s20, 1
        // Predicated region
        $region13: #{tpu_custom_call.1} parent=11 // pred_check
          %p171 = pneg %p93
        $region14: #{tpu_custom_call.1} parent=11 // pred_check_branch
          %173 = sbr.rel (%p171) target = $region16
        $region15: #{tpu_custom_call.1} parent=11 // pred_region
          _
        $region16: #{tpu_custom_call.1} parent=11 // pred_fallthru
          _
        // Predicated region
        $region17: #{tpu_custom_call.1} parent=11 // pred_check
          %p174 = pneg %p114
        $region18: #{tpu_custom_call.1} parent=11 // pred_check_branch
          %176 = sbr.rel (%p174) target = $region20
        $region19: #{tpu_custom_call.1} parent=11 // pred_region
          _
        $region20: #{tpu_custom_call.1} parent=11 // pred_fallthru
          _
        // Predicated region
        $region21: #{tpu_custom_call.1} parent=11 // pred_check
          %p177 = pneg %p135
        $region22: #{tpu_custom_call.1} parent=11 // pred_check_branch
          %179 = sbr.rel (%p177) target = $region24
        $region23: #{tpu_custom_call.1} parent=11 // pred_region
          _
        $region24: #{tpu_custom_call.1} parent=11 // pred_fallthru
          _
      $region12: #{tpu_custom_call.1} parent=5 // pred_fallthru
        _
      %p180 = scmp.lt.s32.totalorder %s20, 3
      // Predicated region
      $region25: #{tpu_custom_call.1} parent=5 // pred_check
        %p181 = pneg %p180
      $region26: #{tpu_custom_call.1} parent=5 // pred_check_branch
        %183 = sbr.rel (%p181) target = $region28
      $region27: #{tpu_custom_call.1} parent=5 // pred_region
        // Predicated region
        $region29: #{tpu_custom_call.1} parent=27 // pred_check
          %p184 = pneg %p40
        $region30: #{tpu_custom_call.1} parent=27 // pred_check_branch
          %186 = sbr.rel (%p184) target = $region32
        $region31: #{tpu_custom_call.1} parent=27 // pred_region
          %p187 = scmp.lt.s32.totalorder %s20, 2
          %s188 = scalar_select %p187, %s20, 2
          %s189 = smul.addr %s188, 4
          %s190 = scalar_lea.vmem %s1, %s189
        $region32: #{tpu_custom_call.1} parent=27 // pred_fallthru
          _
        // Predicated region
        $region33: #{tpu_custom_call.1} parent=27 // pred_check
          %p191 = pneg %p66
        $region34: #{tpu_custom_call.1} parent=27 // pred_check_branch
          %193 = sbr.rel (%p191) target = $region36
        $region35: #{tpu_custom_call.1} parent=27 // pred_region
          %s194 = sand.u32 %s56, 1
          %s195 = scalar_lea.sflag [#allocation12], %s194
          %s196 = sand.u32 %s56, 1
          %s197 = smul.addr %s196, 4
          %s198 = scalar_lea.vmem [#allocation11], %s197
          %s200 = ssub.s32 64, 64
          %201 = vsyncadd %s195, %s200
          %s202 = smul.addr %s20, 64
          %s203 = scalar_lea.hbm %s2, %s202
          %s205 = sshll.u32 %s198, 4
          %s206 = int_to_ptr.vmem [resolvable:$true] %s205
          %208 = dma.hbm_to_vmem [thread:$0]  %s203, 64, %s206, %s195
        $region36: #{tpu_custom_call.1} parent=27 // pred_fallthru
          _
      $region28: #{tpu_custom_call.1} parent=5 // pred_fallthru
        _
      %p209 = scmp.le.s32.totalorder 1, %s20
      %p210 = scmp.lt.s32.totalorder %s20, 4
      %p211 = pnand %p209, %p210
      %p212 = pneg %p211
      // Predicated region
      $region37: #{tpu_custom_call.1} parent=5 // pred_check
        _
      $region38: #{tpu_custom_call.1} parent=5 // pred_check_branch
        %214 = sbr.rel (%p211) target = $region40
      $region39: #{tpu_custom_call.1} parent=5 // pred_region
        %s215 = ssub.s32 %s20, 1
        %s216 = sand.u32 %s59, 1
        %s217 = scalar_lea.sflag [#allocation12], %s216
        %s218 = sand.u32 %s59, 1
        %s219 = smul.addr %s218, 4
        %s220 = scalar_lea.vmem [#allocation11], %s219
        // Predicated region
        $region41: #{tpu_custom_call.1} parent=39 // pred_check
          %p221 = pneg %p72
        $region42: #{tpu_custom_call.1} parent=39 // pred_check_branch
          %223 = sbr.rel (%p221) target = $region44
        $region43: #{tpu_custom_call.1} parent=39 // pred_region
          %224 = dma.done %s217, 64
        $region44: #{tpu_custom_call.1} parent=39 // pred_fallthru
          _
        %p225 = scmp.lt.s32.totalorder %s25, 2
        %s226 = scalar_select %p225, %s25, 2
        %s227 = smul.addr %s226, 4
        %s228 = scalar_lea.vmem %s1, %s227
        %p229 = pneg %p46
        %p230 = pneg %p43
        %s231 = sand.u32 %s59, 1
        %s232 = scalar_lea.sflag [#allocation12], %s231
        %s233 = sand.u32 %s59, 1
        %s234 = smul.addr %s233, 4
        %s235 = scalar_lea.vmem [#allocation11], %s234
        %p236 = pneg %p72
        %p237 = pneg %p69
        %p238 = pneg %p93
        %p239 = pneg %p90
        %p240 = pneg %p114
        %p241 = pneg %p111
        %p242 = pneg %p135
        %p243 = pneg %p132
        %p244 = pneg %p156
        %p245 = pneg %p153
        %p246 = scmp.lt.s32.totalorder %s25, 2
        %s247 = scalar_select %p246, %s25, 2
        %s248 = smul.addr %s247, 4
        %s249 = scalar_lea.vmem %s1, %s248
        %p251 = scmp.eq.s32.totalorder %s25, 0
        // Predicated region
        $region45: #{tpu_custom_call.1} parent=39 // pred_check
          %p252 = pneg %p251
        $region46: #{tpu_custom_call.1} parent=39 // pred_check_branch
          %254 = sbr.rel (%p252) target = $region48
        $region47: #{tpu_custom_call.1} parent=39 // pred_region
          %vm255 = vcmask 64512
          %256 = vst.msk [vmem:[#allocation2] sm:$0xff] %vm255, 0.0
          %257 = vst.msk [vmem:[#allocation3] sm:$0xff] %vm255, 0.0
          %258 = vst.msk [vmem:[#allocation4] sm:$0xff] %vm255, 0.0
          %vm259 = vcmask 7168
          %260 = vst.msk [vmem:[#allocation5] sm:$0xff] %vm259, 0.0
          %261 = vst.msk [vmem:[#allocation6] sm:$0xff] %vm259, 0.0
          %vm262 = vcmask 0
          %263 = vst.msk [vmem:[#allocation8] sm:$0x1] %vm262, 0.0
          %v264 = vld [vmem:[%s3] sm:$0xff]
          %v265 = vlaneseq
          %v266 = vand.u32 %v265, 127
          %v267 = vld [vmem:[%s4] sm:$0xff]
          %268 = vset.pattern.permute.xlu0 0
          %269 = vperm.xlu0 %268, %v267
          %v270 = vpop.permute.xlu0 %269
          %vm271 = vcmp.eq.s32.totalorder %v266, %v270
          %v272 = vsel %vm271, 1, 0
          %v273 = vcvt.s32.f32 %v272
          %vm274 = vcmask 80896
          %v275 = vsel %vm274, %v264, -inf
          %276 = vmax.xlane.f32.xlu0 %v275
          %v277 = vpop.xlane.xlu0 %276
          %v278 = vsub.f32 %v264, %v277
          %v279 = vmul.f32 %v278, 1.442695
          %v280 = vpow.pop %v279
          %v281 = vsel %vm274, %v280, 0.0
          %282 = vadd.xlane.f32.xlu0 %v281
          %v283 = vpop.xlane.xlu0 %282
          %v284 = vrcp.pop %v283
          %v285 = vmul.f32 %v280, %v284
          %v286 = vsub.f32 %v285, %v273
          %v287 = vand.u32 2147483647, %v286
          %vm288 = vcmp.lt.f32.partialorder %v287, 0.1
          %v289 = vsel %vm288, 1.0, 0.0
          %v290 = vmul.f32 %v289, %v273
          %v291 = vsel %vm274, %v290, 0.0
          %292 = vadd.xlane.f32.xlu0 %v291
          %v293 = vpop.xlane.xlu0 %292
          %v294 = vsub.f32 1.0, %v293
          %295 = vst.msk [vmem:[#allocation7] sm:$0xff] %vm259, %v294
        $region48: #{tpu_custom_call.1} parent=39 // pred_fallthru
          _
        %v296 = vld [vmem:[%s249] sm:$0xf]
        %v297 = vld [vmem:[#allocation7] sm:$0xff]
        %v298 = vpack.c.bf16 %v297, %v297
        %300 = vset.pattern.permute.xlu0 0
        %301 = vperm.xlu0 %300, %v298
        %v302 = vpop.permute.xlu0 %301
        %v304 = vmul.bf16 %v296, %v302
        %v305 = vld [vmem:[%s220] sm:$0xf]
        %v306 = vld [vmem:[#allocation2] sm:$0xff]
        %307 = vmatprep.subr.bf16.mxu0 0
        %308 = vmatpush1.bf16.xpose.msra.mxu0 %v304
        %309 = vmatprep.subr.bf16.mxu0 0
        %310 = vmatpush1.bf16.xpose.msra.mxu0 0
        %311 = vmatprep.subr.bf16.mxu0 0
        %312 = vmatpush1.bf16.xpose.msra.mxu0 0
        %313 = vmatprep.subr.bf16.mxu0 0
        %314 = vmatpush1.bf16.xpose.msra.mxu0 0
        %315 = vmatprep.subr.bf16.mxu0 0
        %316 = vmatpush1.bf16.xpose.msra.mxu0 0
        %317 = vmatprep.subr.bf16.mxu0 0
        %318 = vmatpush1.bf16.xpose.msra.mxu0 0
        %319 = vmatprep.subr.bf16.mxu0 0
        %320 = vmatpush1.bf16.xpose.msra.mxu0 0
        %321 = vmatprep.subr.bf16.mxu0 0
        %322 = vmatpush1.bf16.xpose.msra.mxu0 0
        %323 = vmatprep.subr.bf16.mxu0 0
        %324 = vmatpush1.bf16.xpose.msra.mxu0 0
        %325 = vmatprep.subr.bf16.mxu0 0
        %326 = vmatpush1.bf16.xpose.msra.mxu0 0
        %327 = vmatprep.subr.bf16.mxu0 0
        %328 = vmatpush1.bf16.xpose.msra.mxu0 0
        %329 = vmatprep.subr.bf16.mxu0 0
        %330 = vmatpush1.bf16.xpose.msra.mxu0 0
        %331 = vmatprep.subr.bf16.mxu0 0
        %332 = vmatpush1.bf16.xpose.msra.mxu0 0
        %333 = vmatprep.subr.bf16.mxu0 0
        %334 = vmatpush1.bf16.xpose.msra.mxu0 0
        %335 = vmatprep.subr.bf16.mxu0 0
        %336 = vmatpush1.bf16.xpose.msra.mxu0 0
        %337 = vmatprep.subr.bf16.mxu0 0
        %338 = vmatpush1.bf16.xpose.msra.mxu0 0
        %339 = vmatprep.mubr.bf16.mxu0 0
        %340 = vmatmul.mubr.bf16.gmra.mrb[0].mxu0 %v304
        %v341 = vpop.f32.mrb[0].mxu0
        %v342 = vadd.f32 0.0, %v341
        %v343 = vpop.f32.mrb[0].mxu0
        %v344 = vpop.f32.mrb[0].mxu0
        %v345 = vpop.f32.mrb[0].mxu0
        %346 = vdwg.mxu0
        %v347 = vadd.f32 %v306, %v342
        %vm348 = vcmask 64512
        %349 = vst.msk [vmem:[#allocation2] sm:$0xff] %vm348, %v347
        %v350 = vld [vmem:[#allocation3] sm:$0xff]
        %351 = vmatprep.subr.bf16.mxu0 0
        %352 = vmatpush1.bf16.xpose.msra.mxu0 %v305
        %353 = vmatprep.subr.bf16.mxu0 0
        %354 = vmatpush1.bf16.xpose.msra.mxu0 0
        %355 = vmatprep.subr.bf16.mxu0 0
        %356 = vmatpush1.bf16.xpose.msra.mxu0 0
        %357 = vmatprep.subr.bf16.mxu0 0
        %358 = vmatpush1.bf16.xpose.msra.mxu0 0
        %359 = vmatprep.subr.bf16.mxu0 0
        %360 = vmatpush1.bf16.xpose.msra.mxu0 0
        %361 = vmatprep.subr.bf16.mxu0 0
        %362 = vmatpush1.bf16.xpose.msra.mxu0 0
        %363 = vmatprep.subr.bf16.mxu0 0
        %364 = vmatpush1.bf16.xpose.msra.mxu0 0
        %365 = vmatprep.subr.bf16.mxu0 0
        %366 = vmatpush1.bf16.xpose.msra.mxu0 0
        %367 = vmatprep.subr.bf16.mxu0 0
        %368 = vmatpush1.bf16.xpose.msra.mxu0 0
        %369 = vmatprep.subr.bf16.mxu0 0
        %370 = vmatpush1.bf16.xpose.msra.mxu0 0
        %371 = vmatprep.subr.bf16.mxu0 0
        %372 = vmatpush1.bf16.xpose.msra.mxu0 0
        %373 = vmatprep.subr.bf16.mxu0 0
        %374 = vmatpush1.bf16.xpose.msra.mxu0 0
        %375 = vmatprep.subr.bf16.mxu0 0
        %376 = vmatpush1.bf16.xpose.msra.mxu0 0
        %377 = vmatprep.subr.bf16.mxu0 0
        %378 = vmatpush1.bf16.xpose.msra.mxu0 0
        %379 = vmatprep.subr.bf16.mxu0 0
        %380 = vmatpush1.bf16.xpose.msra.mxu0 0
        %381 = vmatprep.subr.bf16.mxu0 0
        %382 = vmatpush1.bf16.xpose.msra.mxu0 0
        %383 = vmatprep.mubr.bf16.mxu0 0
        %384 = vmatmul.mubr.bf16.gmra.mrb[0].mxu0 %v304
        %v385 = vpop.f32.mrb[0].mxu0
        %v386 = vadd.f32 0.0, %v385
        %v387 = vpop.f32.mrb[0].mxu0
        %v388 = vpop.f32.mrb[0].mxu0
        %v389 = vpop.f32.mrb[0].mxu0
        %390 = vdwg.mxu0
        %v391 = vadd.f32 %v350, %v386
        %392 = vst.msk [vmem:[#allocation3] sm:$0xff] %vm348, %v391
        %v393 = vld [vmem:[#allocation4] sm:$0xff]
        %394 = vmatprep.subr.bf16.mxu0 0
        %395 = vmatpush1.bf16.xpose.msra.mxu0 %v305
        %396 = vmatprep.subr.bf16.mxu0 0
        %397 = vmatpush1.bf16.xpose.msra.mxu0 0
        %398 = vmatprep.subr.bf16.mxu0 0
        %399 = vmatpush1.bf16.xpose.msra.mxu0 0
        %400 = vmatprep.subr.bf16.mxu0 0
        %401 = vmatpush1.bf16.xpose.msra.mxu0 0
        %402 = vmatprep.subr.bf16.mxu0 0
        %403 = vmatpush1.bf16.xpose.msra.mxu0 0
        %404 = vmatprep.subr.bf16.mxu0 0
        %405 = vmatpush1.bf16.xpose.msra.mxu0 0
        %406 = vmatprep.subr.bf16.mxu0 0
        %407 = vmatpush1.bf16.xpose.msra.mxu0 0
        %408 = vmatprep.subr.bf16.mxu0 0
        %409 = vmatpush1.bf16.xpose.msra.mxu0 0
        %410 = vmatprep.subr.bf16.mxu0 0
        %411 = vmatpush1.bf16.xpose.msra.mxu0 0
        %412 = vmatprep.subr.bf16.mxu0 0
        %413 = vmatpush1.bf16.xpose.msra.mxu0 0
        %414 = vmatprep.subr.bf16.mxu0 0
        %415 = vmatpush1.bf16.xpose.msra.mxu0 0
        %416 = vmatprep.subr.bf16.mxu0 0
        %417 = vmatpush1.bf16.xpose.msra.mxu0 0
        %418 = vmatprep.subr.bf16.mxu0 0
        %419 = vmatpush1.bf16.xpose.msra.mxu0 0
        %420 = vmatprep.subr.bf16.mxu0 0
        %421 = vmatpush1.bf16.xpose.msra.mxu0 0
        %422 = vmatprep.subr.bf16.mxu0 0
        %423 = vmatpush1.bf16.xpose.msra.mxu0 0
        %424 = vmatprep.subr.bf16.mxu0 0
        %425 = vmatpush1.bf16.xpose.msra.mxu0 0
        %426 = vmatprep.mubr.bf16.mxu0 0
        %427 = vmatmul.mubr.bf16.gmra.mrb[0].mxu0 %v305
        %v428 = vpop.f32.mrb[0].mxu0
        %v429 = vadd.f32 0.0, %v428
        %v430 = vpop.f32.mrb[0].mxu0
        %v431 = vpop.f32.mrb[0].mxu0
        %v432 = vpop.f32.mrb[0].mxu0
        %433 = vdwg.mxu0
        %v434 = vadd.f32 %v393, %v429
        %435 = vst.msk [vmem:[#allocation4] sm:$0xff] %vm348, %v434
        %v436 = vunpack.c.l.bf16 %v304
        %v437 = vunpack.c.l.bf16 %v305
        %v438 = vld [vmem:[#allocation5] sm:$0xff]
        %v439 = vmul.f32 %v436, %v436
        %440 = vadd.xlane.f32.xlu0 %v439
        %v441 = vpop.xlane.xlu0 %440
        %v442 = vadd.f32 %v438, %v441
        %vm443 = vcmask 7168
        %444 = vst.msk [vmem:[#allocation5] sm:$0xff] %vm443, %v442
        %v445 = vld [vmem:[#allocation6] sm:$0xff]
        %v446 = vmul.f32 %v437, %v437
        %447 = vadd.xlane.f32.xlu0 %v446
        %v448 = vpop.xlane.xlu0 %447
        %v449 = vadd.f32 %v445, %v448
        %450 = vst.msk [vmem:[#allocation6] sm:$0xff] %vm443, %v449
        %s451 = sadd.s32 %s25, 1
        %s452 = sld [smem:[#allocation10 + %s451]]
        %s453 = sld [smem:[#allocation10 + %s25]]
        %p454 = scmp.ne.s32.totalorder %s452, %s453
        // Predicated region
        $region49: #{tpu_custom_call.1} parent=39 // pred_check
          %p455 = pneg %p454
        $region50: #{tpu_custom_call.1} parent=39 // pred_check_branch
          %457 = sbr.rel (%p455) target = $region52
        $region51: #{tpu_custom_call.1} parent=39 // pred_region
          %v458 = vlaneseq
          %v459 = vshrl.u32 %v458, 7
          %v460 = vlaneseq
          %v461 = vand.u32 %v460, 127
          %vm462 = vcmp.eq.s32.totalorder %v459, %v461
          %v463 = vsel %vm462, 1, 0
          %v464 = vcvt.s32.f32 %v463
          %v465 = vld [vmem:[#allocation5] sm:$0xff]
          %v466 = vrsqrt.pop %v465
          %v467 = vmul.f32 %v465, %v466
          %vm468 = vcmp.eq.f32.partialorder %v465, inf
          %v469 = vsel %vm468, %v465, %v467
          %vm470 = vcmp.eq.f32.partialorder %v465, 0.0
          %v471 = vand.u32 %v465, 2147483648
          %v472 = vsel %vm470, %v471, %v469
          %v473 = vadd.f32 %v472, 1e-08
          %v474 = vld [vmem:[#allocation6] sm:$0xff]
          %v475 = vrsqrt.pop %v474
          %v476 = vmul.f32 %v474, %v475
          %vm477 = vcmp.eq.f32.partialorder %v474, inf
          %v478 = vsel %vm477, %v474, %v476
          %vm479 = vcmp.eq.f32.partialorder %v474, 0.0
          %v480 = vand.u32 %v474, 2147483648
          %v481 = vsel %vm479, %v480, %v478
          %v482 = vadd.f32 %v481, 1e-08
          %484 = vset.pattern.permute.xlu0 0
          %485 = vperm.xlu0 %484, %v473
          %v486 = vpop.permute.xlu0 %485
          %v488 = vsel %vm462, %v486, 0.0
          %v489 = vsel %vm348, %v488, 0.0
          %v490 = vrot.slane %v489, 4
          %v491 = vadd.f32 %v489, %v490
          %v492 = vrot.slane %v491, 2
          %v493 = vadd.f32 %v491, %v492
          %v494 = vrot.slane %v493, 1
          %v495 = vadd.f32 %v493, %v494
          %497 = vset.pattern.permute.xlu0 0
          %498 = vperm.xlu0 %497, %v482
          %v499 = vpop.permute.xlu0 %498
          %v501 = vsel %vm462, %v499, 0.0
          %v502 = vsel %vm348, %v501, 0.0
          %v503 = vrot.slane %v502, 4
          %v504 = vadd.f32 %v502, %v503
          %v505 = vrot.slane %v504, 2
          %v506 = vadd.f32 %v504, %v505
          %v507 = vrot.slane %v506, 1
          %v508 = vadd.f32 %v506, %v507
          %v509 = vld [vmem:[#allocation3] sm:$0xff]
          %v510 = vmul.f32 %v486, %v508
          %v511 = vrcp.pop %v510
          %v512 = vmul.f32 %v509, %v511
          %v513 = vld [vmem:[#allocation2] sm:$0xff]
          %v514 = vmul.f32 %v486, %v495
          %v515 = vrcp.pop %v514
          %v516 = vmul.f32 %v513, %v515
          %v517 = vld [vmem:[#allocation4] sm:$0xff]
          %v518 = vmul.f32 %v499, %v508
          %v519 = vrcp.pop %v518
          %v520 = vmul.f32 %v517, %v519
          %v521 = vld [vmem:[%s4] sm:$0xff]
          %522 = vset.pattern.permute.xlu0 0
          %523 = vperm.xlu0 %522, %v521
          %v524 = vpop.permute.xlu0 %523
          %v525 = vld [vmem:[%s5] sm:$0x1]
          %v526 = vlaneseq
          %v527 = vshrl.u32 %v526, 7
          %v528 = vsub.s32 0, %v527
          %v529 = vrot.slane %v525, %v528
          %vm530 = vcmp.eq.s32.totalorder %v524, %v529
          %v531 = vsel %vm530, 1, 0
          %v532 = vcvt.s32.f32 %v531
          %v533 = vsub.f32 %v512, %v532
          %v534 = vmul.f32 %v533, %v533
          %v535 = vsel %vm348, %v534, 0.0
          %536 = vadd.xlane.f32.xlu0 %v535
          %v537 = vpop.xlane.xlu0 %536
          %v538 = vrot.slane %v537, 4
          %v539 = vadd.f32 %v537, %v538
          %v540 = vrot.slane %v539, 2
          %v541 = vadd.f32 %v539, %v540
          %v542 = vrot.slane %v541, 1
          %v543 = vadd.f32 %v541, %v542
          %s544 = vtos %v543
          %v545 = vrcp.pop 64.0
          %s546 = vtos %v545
          %s547 = smul.f32 %s544, %s546
          %v548 = vsub.f32 %v516, %v464
          %v549 = vmul.f32 %v548, %v548
          %v550 = vsel %vm348, %v549, 0.0
          %551 = vadd.xlane.f32.xlu0 %v550
          %v552 = vpop.xlane.xlu0 %551
          %v553 = vrot.slane %v552, 4
          %v554 = vadd.f32 %v552, %v553
          %v555 = vrot.slane %v554, 2
          %v556 = vadd.f32 %v554, %v555
          %v557 = vrot.slane %v556, 1
          %v558 = vadd.f32 %v556, %v557
          %s559 = vtos %v558
          %v560 = vrcp.pop 64.0
          %s561 = vtos %v560
          %s562 = smul.f32 %s559, %s561
          %s563 = smul.f32 %s562, 0.5
          %s564 = sadd.f32 %s547, %s563
          %v565 = vsub.f32 %v520, %v464
          %v566 = vmul.f32 %v565, %v565
          %v567 = vsel %vm348, %v566, 0.0
          %568 = vadd.xlane.f32.xlu0 %v567
          %v569 = vpop.xlane.xlu0 %568
          %v570 = vrot.slane %v569, 4
          %v571 = vadd.f32 %v569, %v570
          %v572 = vrot.slane %v571, 2
          %v573 = vadd.f32 %v571, %v572
          %v574 = vrot.slane %v573, 1
          %v575 = vadd.f32 %v573, %v574
          %s576 = vtos %v575
          %v577 = vrcp.pop 64.0
          %s578 = vtos %v577
          %s579 = smul.f32 %s576, %s578
          %s580 = smul.f32 %s579, 0.5
          %s581 = sadd.f32 %s564, %s580
          %v582 = vld [vmem:[#allocation8] sm:$0x1]
          %v583 = vstv %s581
          %v584 = vadd.f32 %v582, %v583
          %vm585 = vcmask 0
          %586 = vst.msk [vmem:[#allocation8] sm:$0x1] %vm585, %v584
          %587 = vst.msk [vmem:[#allocation2] sm:$0xff] %vm348, 0.0
          %588 = vst.msk [vmem:[#allocation3] sm:$0xff] %vm348, 0.0
          %589 = vst.msk [vmem:[#allocation4] sm:$0xff] %vm348, 0.0
          %590 = vst.msk [vmem:[#allocation5] sm:$0xff] %vm443, 0.0
          %591 = vst.msk [vmem:[#allocation6] sm:$0xff] %vm443, 0.0
          %p592 = scmp.eq.s32.totalorder %s25, 2
          // Predicated region
          $region53: #{tpu_custom_call.1} parent=51 // pred_check
            %p593 = pneg %p592
          $region54: #{tpu_custom_call.1} parent=51 // pred_check_branch
            %595 = sbr.rel (%p593) target = $region56
          $region55: #{tpu_custom_call.1} parent=51 // pred_region
            %v596 = vld [vmem:[%s3] sm:$0xff]
            %v597 = vld [vmem:[%s4] sm:$0xff]
            %598 = vset.pattern.permute.xlu0 0
            %599 = vperm.xlu0 %598, %v597
            %v600 = vpop.permute.xlu0 %599
            %vm601 = vcmp.eq.s32.totalorder %v461, %v600
            %v602 = vsel %vm601, 1, 0
            %v603 = vcvt.s32.f32 %v602
            %vm604 = vcmask 80896
            %v605 = vsel %vm604, %v596, -inf
            %606 = vmax.xlane.f32.xlu0 %v605
            %v607 = vpop.xlane.xlu0 %606
            %v608 = vsub.f32 %v596, %v607
            %v609 = vmul.f32 %v608, 1.442695
            %v610 = vpow.pop %v609
            %v611 = vsel %vm604, %v610, 0.0
            %612 = vadd.xlane.f32.xlu0 %v611
            %v613 = vpop.xlane.xlu0 %612
            %v614 = vlog2.pop %v613
            %v615 = vmul.f32 %v614, 0.6931472
            %v616 = vadd.f32 %v615, %v607
            %v617 = vmul.f32 %v603, %v596
            %v618 = vsel %vm604, %v617, 0.0
            %619 = vadd.xlane.f32.xlu0 %v618
            %v620 = vpop.xlane.xlu0 %619
            %v621 = vsub.f32 %v616, %v620
            %v622 = vsel %vm443, %v621, 0.0
            %623 = vadd.xlane.f32.xlu0 %v622
            %v624 = vpop.xlane.xlu0 %623
            %v625 = vrot.slane %v624, 4
            %v626 = vadd.f32 %v624, %v625
            %v627 = vrot.slane %v626, 2
            %v628 = vadd.f32 %v626, %v627
            %v629 = vrot.slane %v628, 1
            %v630 = vadd.f32 %v628, %v629
            %s631 = vtos %v630
            %v632 = vrcp.pop 8.0
            %s633 = vtos %v632
            %s634 = smul.f32 %s631, %s633
            %v635 = vld [vmem:[#allocation8] sm:$0x1]
            %v636 = vadd.f32 %v635, 0.0
            %s637 = vtos %v636
            %s638 = sadd.f32 %s637, %s634
            %v639 = vstv %s638
            %v640 = vstv %s634
            %vm641 = vcmask 1040384
            %v642 = vsel %vm641, %v639, %v640
            %643 = vst [vmem:[#allocation14] sm:$0x3] %v642
          $region56: #{tpu_custom_call.1} parent=51 // pred_fallthru
            _
        $region52: #{tpu_custom_call.1} parent=39 // pred_fallthru
          _
        // Predicated region
        $region57: #{tpu_custom_call.1} parent=39 // pred_check
          %p644 = pneg %p153
        $region58: #{tpu_custom_call.1} parent=39 // pred_check_branch
          %646 = sbr.rel (%p644) target = $region60
        $region59: #{tpu_custom_call.1} parent=39 // pred_region
          %s648 = ssub.s32 32, 32
          %649 = vsyncadd [#allocation13], %s648
          %s651 = sshll.u32 [#allocation14], 4
          %s652 = int_to_ptr.vmem [resolvable:$true] %s651
          %654 = dma.vmem_to_hbm [thread:$0]  %s652, 32, %s6, [#allocation13]
        $region60: #{tpu_custom_call.1} parent=39 // pred_fallthru
          _
        // Predicated region
        $region61: #{tpu_custom_call.1} parent=39 // pred_check
          %p655 = pneg %p153
        $region62: #{tpu_custom_call.1} parent=39 // pred_check_branch
          %657 = sbr.rel (%p655) target = $region64
        $region63: #{tpu_custom_call.1} parent=39 // pred_region
          %658 = dma.done [#allocation13], 32
        $region64: #{tpu_custom_call.1} parent=39 // pred_fallthru
          _
      $region40: #{tpu_custom_call.1} parent=5 // pred_fallthru
        _
      %p659 = scmp.le.s32.totalorder 2, %s20
      // Predicated region
      $region65: #{tpu_custom_call.1} parent=5 // pred_check
        %p660 = pneg %p659
      $region66: #{tpu_custom_call.1} parent=5 // pred_check_branch
        %662 = sbr.rel (%p660) target = $region68
      $region67: #{tpu_custom_call.1} parent=5 // pred_region
        %s663 = ssub.s32 %s20, 2
      $region68: #{tpu_custom_call.1} parent=5 // pred_fallthru
        _
    $region6: #{tpu_custom_call.1} parent=1 // loop_footer
      %s24 = sadd.s32 1, %s20
    $region7: #{tpu_custom_call.1} parent=1 // loop_footer_branch
      %19 = sbr.rel target = $region3
    $region8: #{tpu_custom_call.1} parent=1 // loop_exit
      _
    %664 = vsyncpa [#allocation12], 1
    %s665 = scalar_lea.sflag [#allocation12], 1
    %666 = vsyncpa %s665, 1
    %667 = vsyncpa [#allocation13], 1
    %s668 = scalar_lea.sflag [#allocation13], 1
    %669 = vsyncpa %s668, 1

</llo_original>
